<compile_context>
chip_gen: v7x
topology: tpu7x:2x2x1
jax: 0.10.0
libtpu: 0.0.40
codegen_flags: <defaults>
</compile_context>

<pallas_src>
import jax
import jax.numpy as jnp
from jax import lax
from jax.experimental import pallas as pl
from jax.experimental.pallas import tpu as pltpu

INPUT_SIZE = 8     # ['Age','Bodyweight','Experience','Session','Weight',
                   #  'Volume','Delta_Weight','Delta_Volume']
HIDDEN1 = 128
HIDDEN2 = 64
OUTPUT_SIZE = 2

# Default batch tile (lanes).  Live VMEM per batch column is ~0.85-1 KiB
# (x block lane-padded, h1/h2 f32, double-buffered out), so 8192 is ~14 MiB:
# fits v5e/v6e/v7x with the explicit 32 MiB scoped-VMEM limit below while
# amortizing the fixed ~0.35 us per-grid-step pipeline overhead.
TILE_B = 8192

# Below this many rows the Pallas call's fixed costs dominate -> use plain XLA.
MIN_PALLAS_BATCH = TILE_B


def _round_up(n, m):
    return ((n + m - 1) // m) * m


def _mlp_kernel(x_ref, w1_ref, b1_ref, w2_ref, b2_ref, w3_ref, b3_ref, o_ref):
    # x tile: [tile_b, 8] (PyTorch row-major block). Weights [out, in], biases [out, 1].
    x = x_ref[...]                       # [tile_b, 8]

    # fc1 + relu: contract the 8-feature axis of both operands ("NT" form), so
    # the batch stays in lanes without a host-side transpose:
    #   [128, 8] x [tile_b, 8]^T -> [128, tile_b]
    h1 = lax.dot_general(w1_ref[...], x, (((1,), (1,)), ((), ())),
                         preferred_element_type=jnp.float32)
    h1 = jnp.maximum(h1 + b1_ref[...], 0.0)

    # fc2 + relu: [64, 128] @ [128, tile_b] -> [64, tile_b]
    h2 = jnp.dot(w2_ref[...], h1, preferred_element_type=jnp.float32)
    h2 = jnp.maximum(h2 + b2_ref[...], 0.0)

    # fc3 (no activation): [2, 64] @ [64, tile_b] -> [2, tile_b]
    # NOTE: fc3 could be done as 2 VPU/XLU sublane-weighted sums to drop one
    # MXU pass per tile (~15% per review) -- left on the MXU pending a bundle
    # dump confirming vmatmul is the saturating slot.
    out = jnp.dot(w3_ref[...], h2, preferred_element_type=jnp.float32)
    o_ref[...] = (out + b3_ref[...]).astype(o_ref.dtype)


def _forward_xla(x, params):
    """Plain fused XLA path (PyTorch semantics: y = x @ W.T + b)."""
    h1 = jnp.maximum(x @ params["w1"].T + params["b1"].T, 0.0)
    h2 = jnp.maximum(h1 @ params["w2"].T + params["b2"].T, 0.0)
    return h2 @ params["w3"].T + params["b3"].T


def _forward_pallas(x, params, tile_b, use_bf16=False):
    B = x.shape[0]
    w1, b1 = params["w1"], params["b1"]   # [128, 8], [128, 1]
    w2, b2 = params["w2"], params["b2"]   # [64, 128], [64, 1]
    w3, b3 = params["w3"], params["b3"]   # [2, 64],   [2, 1]

    if use_bf16:
        # Optional (v6e/v7x): halve x's HBM/DMA bytes and use the bf16-native
        # MXU path; biases and accumulation stay f32. Precision tradeoff.
        x = x.astype(jnp.bfloat16)
        w1, w2, w3 = (w.astype(jnp.bfloat16) for w in (w1, w2, w3))

    assert tile_b % 128 == 0, "tile_b must be a multiple of 128 (lane width)"
    n_tiles = pl.cdiv(B, tile_b)
    if n_tiles > 1 and n_tiles % 2 == 1:
        # Prefer an even tile count so the "parallel" batch axis splits evenly
        # across v7x's 2 TensorCores; only shrink the tile if that actually
        # yields an even count (keep it a multiple of 256 for the 256^2 MXU).
        cand = max(256, _round_up(pl.cdiv(B, n_tiles + 1), 256))
        if pl.cdiv(B, cand) % 2 == 0:
            tile_b = cand
            n_tiles = pl.cdiv(B, cand)

    def const_spec(shape):
        # Full-array block + constant index map -> resident in VMEM across all
        # grid steps (no per-tile re-DMA of the ~37 KiB of weights/biases).
        return pl.BlockSpec(shape, lambda i: (0, 0))

    out_t = pl.pallas_call(
        _mlp_kernel,
        out_shape=jax.ShapeDtypeStruct((OUTPUT_SIZE, B), jnp.float32),
        grid=(n_tiles,),
        in_specs=[
            # x consumed directly in PyTorch [B, 8] layout; Pallas masks the
            # ragged last tile (garbage padded columns never cross columns and
            # are never written back).
            pl.BlockSpec((tile_b, INPUT_SIZE), lambda i: (i, 0)),
            const_spec(w1.shape), const_spec(b1.shape),
            const_spec(w2.shape), const_spec(b2.shape),
            const_spec(w3.shape), const_spec(b3.shape),
        ],
        # Lane-dense [2, tile_b] output store (batch in lanes).
        out_specs=pl.BlockSpec((OUTPUT_SIZE, tile_b), lambda i: (0, i)),
        compiler_params=pltpu.CompilerParams(
            dimension_semantics=("parallel",),
            vmem_limit_bytes=32 * 1024 * 1024,
        ),
    )(x, w1, b1, w2, b2, w3, b3)

    # Output is only 2 rows wide; this transpose is negligible HBM traffic.
    return out_t.T


def workout_model_forward(x, params, tile_b=TILE_B, use_bf16=False,
                          min_pallas_batch=MIN_PALLAS_BATCH):
    """x: [B, INPUT_SIZE] float32 (PyTorch layout). Returns [B, OUTPUT_SIZE]."""
    B = x.shape[0]
    if B < min_pallas_batch:
        # Small-batch fallback: a one-tile pallas_call pays layout + pipeline
        # setup for microseconds of work; plain XLA wins here.
        return _forward_xla(x, params)
    return _forward_pallas(x, params, tile_b, use_bf16=use_bf16)


def init_params(key):
    """Deterministic init mimicking nn.Linear default (uniform +/- 1/sqrt(fan_in)),
    stored PyTorch-native [out, in] (biases as [out, 1])."""
    ks = jax.random.split(key, 6)

    def linear(kw, kb, fan_in, fan_out):
        bound = 1.0 / jnp.sqrt(jnp.float32(fan_in))
        w = jax.random.uniform(kw, (fan_out, fan_in), jnp.float32, -bound, bound)
        b = jax.random.uniform(kb, (fan_out, 1), jnp.float32, -bound, bound)
        return w, b

    w1, b1 = linear(ks[0], ks[1], INPUT_SIZE, HIDDEN1)
    w2, b2 = linear(ks[2], ks[3], HIDDEN1, HIDDEN2)
    w3, b3 = linear(ks[4], ks[5], HIDDEN2, OUTPUT_SIZE)
    return {"w1": w1, "b1": b1, "w2": w2, "b2": b2, "w3": w3, "b3": b3}


if __name__ == "__main__":
    key = jax.random.PRNGKey(0)
    k_params, k_x_small, k_x_big = jax.random.split(key, 3)

    params = init_params(k_params)

    # 1) Pallas path: small test tile so a modest batch exercises multiple grid
    #    steps plus a ragged partial last tile (600 = 2 full tiles + 88 rows).
    B_big, tile_test = 600, 256
    x_big = jax.random.normal(k_x_big, (B_big, INPUT_SIZE), dtype=jnp.float32)
    out_big = workout_model_forward(x_big, params, tile_b=tile_test,
                                    min_pallas_batch=0)
    jax.block_until_ready(out_big)
    ref_big = _forward_xla(x_big, params)
    assert out_big.shape == (B_big, OUTPUT_SIZE)
    assert jnp.allclose(out_big, ref_big, atol=1e-4, rtol=1e-4)

    # 2) Small-batch fallback path (plain fused XLA).
    B_small = 8
    x_small = jax.random.normal(k_x_small, (B_small, INPUT_SIZE),
                                dtype=jnp.float32)
    out_small = workout_model_forward(x_small, params)
    jax.block_until_ready(out_small)
    ref_small = _forward_xla(x_small, params)
    assert out_small.shape == (B_small, OUTPUT_SIZE)
    assert jnp.allclose(out_small, ref_small, atol=1e-4, rtol=1e-4)

    print("KERNEL_OK")
</pallas_src>

<mosaic_0001>
module attributes {stable_mosaic.version = 11 : i64} {
  func.func @_mlp_kernel(%arg0: i32, %arg1: memref<256x8xf32, #tpu.memory_space<vmem>>, %arg2: memref<128x8xf32, #tpu.memory_space<vmem>>, %arg3: memref<128x1xf32, #tpu.memory_space<vmem>>, %arg4: memref<64x128xf32, #tpu.memory_space<vmem>>, %arg5: memref<64x1xf32, #tpu.memory_space<vmem>>, %arg6: memref<2x64xf32, #tpu.memory_space<vmem>>, %arg7: memref<2x1xf32, #tpu.memory_space<vmem>>, %arg8: memref<2x256xf32, #tpu.memory_space<vmem>>) attributes {dimension_semantics = [#tpu.dimension_semantics<parallel>], iteration_bounds = array<i64: 3>, scalar_prefetch = 0 : i64, scratch_operands = 0 : i64, tpu.core_type = #tpu.core_type<tc>, window_params = [{transform_indices = @transform_0, window_bounds = array<i64: 256, 8>}, {pipeline_mode = #tpu.pipeline_mode<synchronous>, transform_indices = @transform_1, window_bounds = array<i64: 128, 8>}, {pipeline_mode = #tpu.pipeline_mode<synchronous>, transform_indices = @transform_2, window_bounds = array<i64: 128, 1>}, {pipeline_mode = #tpu.pipeline_mode<synchronous>, transform_indices = @transform_3, window_bounds = array<i64: 64, 128>}, {pipeline_mode = #tpu.pipeline_mode<synchronous>, transform_indices = @transform_4, window_bounds = array<i64: 64, 1>}, {pipeline_mode = #tpu.pipeline_mode<synchronous>, transform_indices = @transform_5, window_bounds = array<i64: 2, 64>}, {pipeline_mode = #tpu.pipeline_mode<synchronous>, transform_indices = @transform_6, window_bounds = array<i64: 2, 1>}, {transform_indices = @transform_7, window_bounds = array<i64: 2, 256>}]} {
    %c0 = arith.constant 0 : index
    %c0_0 = arith.constant 0 : index
    %0 = vector.load %arg1[%c0, %c0_0] : memref<256x8xf32, #tpu.memory_space<vmem>>, vector<256x8xf32>
    %c0_1 = arith.constant 0 : index
    %c0_2 = arith.constant 0 : index
    %1 = vector.load %arg2[%c0_1, %c0_2] : memref<128x8xf32, #tpu.memory_space<vmem>>, vector<128x8xf32>
    %cst = arith.constant dense<0.000000e+00> : vector<128x256xf32>
    %2 = tpu.matmul %1, %0, %cst {dimension_numbers = #tpu.dot_dimension_numbers<[1], [1], [0], [0], [0, 0, 1, 0], [], []>} : vector<128x8xf32>, vector<256x8xf32>, vector<128x256xf32> -> vector<128x256xf32>
    %c0_3 = arith.constant 0 : index
    %c0_4 = arith.constant 0 : index
    %3 = vector.load %arg3[%c0_3, %c0_4] : memref<128x1xf32, #tpu.memory_space<vmem>>, vector<128x1xf32>
    %4 = vector.broadcast %3 : vector<128x1xf32> to vector<128x256xf32>
    %5 = arith.addf %2, %4 : vector<128x256xf32>
    %cst_5 = arith.constant 0.000000e+00 : f32
    %6 = vector.broadcast %cst_5 : f32 to vector<128x256xf32>
    %7 = arith.maximumf %5, %6 : vector<128x256xf32>
    %c0_6 = arith.constant 0 : index
    %c0_7 = arith.constant 0 : index
    %8 = vector.load %arg4[%c0_6, %c0_7] : memref<64x128xf32, #tpu.memory_space<vmem>>, vector<64x128xf32>
    %cst_8 = arith.constant dense<0.000000e+00> : vector<64x256xf32>
    %9 = tpu.matmul %8, %7, %cst_8 {dimension_numbers = #tpu.dot_dimension_numbers<[1], [0], [0], [1], [0, 0, 1, 1], [], []>} : vector<64x128xf32>, vector<128x256xf32>, vector<64x256xf32> -> vector<64x256xf32>
    %c0_9 = arith.constant 0 : index
    %c0_10 = arith.constant 0 : index
    %10 = vector.load %arg5[%c0_9, %c0_10] : memref<64x1xf32, #tpu.memory_space<vmem>>, vector<64x1xf32>
    %11 = vector.broadcast %10 : vector<64x1xf32> to vector<64x256xf32>
    %12 = arith.addf %9, %11 : vector<64x256xf32>
    %cst_11 = arith.constant 0.000000e+00 : f32
    %13 = vector.broadcast %cst_11 : f32 to vector<64x256xf32>
    %14 = arith.maximumf %12, %13 : vector<64x256xf32>
    %c0_12 = arith.constant 0 : index
    %c0_13 = arith.constant 0 : index
    %15 = vector.load %arg6[%c0_12, %c0_13] : memref<2x64xf32, #tpu.memory_space<vmem>>, vector<2x64xf32>
    %cst_14 = arith.constant dense<0.000000e+00> : vector<2x256xf32>
    %16 = tpu.matmul %15, %14, %cst_14 {dimension_numbers = #tpu.dot_dimension_numbers<[1], [0], [0], [1], [0, 0, 1, 1], [], []>} : vector<2x64xf32>, vector<64x256xf32>, vector<2x256xf32> -> vector<2x256xf32>
    %c0_15 = arith.constant 0 : index
    %c0_16 = arith.constant 0 : index
    %17 = vector.load %arg7[%c0_15, %c0_16] : memref<2x1xf32, #tpu.memory_space<vmem>>, vector<2x1xf32>
    %18 = vector.broadcast %17 : vector<2x1xf32> to vector<2x256xf32>
    %19 = arith.addf %16, %18 : vector<2x256xf32>
    %c0_17 = arith.constant 0 : index
    %c0_18 = arith.constant 0 : index
    %20 = vector.load %arg8[%c0_17, %c0_18] : memref<2x256xf32, #tpu.memory_space<vmem>>, vector<2x256xf32>
    tpu.vector_store %arg8[%c0_17, %c0_18], %19 {strides = array<i32>} : memref<2x256xf32, #tpu.memory_space<vmem>>, vector<2x256xf32>,
    return
  }
  func.func @transform_0(%arg0: i32) -> (i32, i32) {
    %c0_i32 = arith.constant 0 : i32
    %c0_i32_0 = arith.constant 0 : i32
    return %arg0, %c0_i32 : i32, i32
  }
  func.func @transform_1(%arg0: i32) -> (i32, i32) {
    %c0_i32 = arith.constant 0 : i32
    %c0_i32_0 = arith.constant 0 : i32
    %c0_i32_1 = arith.constant 0 : i32
    return %c0_i32, %c0_i32_0 : i32, i32
  }
  func.func @transform_2(%arg0: i32) -> (i32, i32) {
    %c0_i32 = arith.constant 0 : i32
    %c0_i32_0 = arith.constant 0 : i32
    %c0_i32_1 = arith.constant 0 : i32
    return %c0_i32, %c0_i32_0 : i32, i32
  }
  func.func @transform_3(%arg0: i32) -> (i32, i32) {
    %c0_i32 = arith.constant 0 : i32
    %c0_i32_0 = arith.constant 0 : i32
    %c0_i32_1 = arith.constant 0 : i32
    return %c0_i32, %c0_i32_0 : i32, i32
  }
  func.func @transform_4(%arg0: i32) -> (i32, i32) {
    %c0_i32 = arith.constant 0 : i32
    %c0_i32_0 = arith.constant 0 : i32
    %c0_i32_1 = arith.constant 0 : i32
    return %c0_i32, %c0_i32_0 : i32, i32
  }
  func.func @transform_5(%arg0: i32) -> (i32, i32) {
    %c0_i32 = arith.constant 0 : i32
    %c0_i32_0 = arith.constant 0 : i32
    %c0_i32_1 = arith.constant 0 : i32
    return %c0_i32, %c0_i32_0 : i32, i32
  }
  func.func @transform_6(%arg0: i32) -> (i32, i32) {
    %c0_i32 = arith.constant 0 : i32
    %c0_i32_0 = arith.constant 0 : i32
    %c0_i32_1 = arith.constant 0 : i32
    return %c0_i32, %c0_i32_0 : i32, i32
  }
  func.func @transform_7(%arg0: i32) -> (i32, i32) {
    %c0_i32 = arith.constant 0 : i32
    %c0_i32_0 = arith.constant 0 : i32
    return %c0_i32, %arg0 : i32, i32
  }
}

</mosaic_0001>

<llo_original>
// kernel: tpu_custom_call.1
$region0: #{tpu_custom_call.1}
  #allocation0 [shape = 'u32[]', space=smem, size = 0x4, offset = 0x4, fixed_abs, tag = 'smem constant byte address 0x4 - core index']
  #allocation1 [shape = 'u32[144,128]{1,0:T(1,128)}', space=vmem, size = 0x12000, scoped, tag = 'internal scratch']
  %s0 = inlined_call_operand.vmem [shape: f32[600,8], index: 0, kind: input, shape index: {}]
  %s1 = inlined_call_operand.vmem [shape: f32[128,8], index: 1, kind: input, shape index: {}]
  %s2 = inlined_call_operand.vmem [shape: f32[128,1], index: 2, kind: input, shape index: {}]
  %s3 = inlined_call_operand.vmem [shape: f32[64,128], index: 3, kind: input, shape index: {}]
  %s4 = inlined_call_operand.vmem [shape: f32[64,1], index: 4, kind: input, shape index: {}]
  %s5 = inlined_call_operand.vmem [shape: f32[2,64], index: 5, kind: input, shape index: {}]
  %s6 = inlined_call_operand.vmem [shape: f32[2,1], index: 6, kind: input, shape index: {}]
  %s7 = inlined_call_operand.hbm [shape: f32[2,600], index: 7, kind: output, shape index: {}]
  %s8 = sld [smem:[#allocation0]]
  $region61: #{tpu_custom_call.1} parent=0
    _
  %s10 = ssub.s32 1, %s8
  %s11 = scalar_select 0, %s10, %s8
  $region1: #{tpu_custom_call.1} parent=0
    #allocation2 [shape = 'u8[4096]{0}', space=vmem, size = 0x1000, scoped, tag = 'output window, operand 0']
    #allocation3 [shape = 's32[2]{0}', space=sflag, size = 0x8, scoped, tag = 'scoped memory for tpu_custom_call.1']
    %12 = vsyncpa [#allocation3], 0
    %s13 = scalar_lea.sflag [#allocation3], 1
    %14 = vsyncpa %s13, 0
    loop: start=0, step=1, limit=5
    $region2: #{tpu_custom_call.1} parent=1 // loop_pre_header
      _
    $region3: #{tpu_custom_call.1} parent=1 // loop_header
      %s16 = sphi 0, %s20
      %p17 = scmp.ge.s32.totalorder %s16, 5
      %s26 = sphi 0, %s28
      %s29 = sphi 0, %s26
      %s30 = sphi 0, %s29
      %s46 = sphi 0, %s30
      %s50 = sphi 0, %s50
      %s52 = sphi 0, %s50
      %s53 = sphi 0, %s52
      %s67 = sphi 0, %s53
      %s71 = sphi 0, %s71
      %s73 = sphi 0, %s71
      %s74 = sphi 0, %s73
      %s88 = sphi 0, %s74
      %s92 = sphi 0, %s92
      %s94 = sphi 0, %s92
      %s95 = sphi 0, %s94
      %s109 = sphi 0, %s95
      %s113 = sphi 0, %s113
      %s115 = sphi 0, %s113
      %s116 = sphi 0, %s115
      %s130 = sphi 0, %s116
      %s134 = sphi 0, %s134
      %s136 = sphi 0, %s134
      %s137 = sphi 0, %s136
      %s151 = sphi 0, %s137
      %s155 = sphi 0, %s155
      %s157 = sphi 0, %s155
      %s158 = sphi 0, %s157
      %s172 = sphi 0, %s158
      %s178 = sphi 0, %s180
      %s181 = sphi 0, %s178
      %s182 = sphi 0, %s181
      %s198 = sphi 0, %s182
    $region4: #{tpu_custom_call.1} parent=1 // loop_header_branch
      %19 = sbr.rel (%p17) target = $region8
    $region5: #{tpu_custom_call.1} parent=1 // loop_body
      %s21 = ssub.s32 %s16, 1
      %s22 = ssub.s32 %s16, 2
      %s23 = sadd.s32 %s16, 1
      %s24 = ssub.s32 %s16, %s23
      %p25 = scmp.eq.s32.totalorder %s24, 0
      %s27 = sadd.s32 %s26, 1
      %s28 = scalar_select %p25, %s26, %s27
      %p31 = pneg %p25
      %p32 = scmp.eq.s32.totalorder %s16, 2
      %p33 = por %p31, %p32
      %p34 = scmp.ne.s32.totalorder %s26, %s29
      %p35 = scmp.eq.s32.totalorder %s16, 0
      %p36 = por %p34, %p35
      %p37 = scmp.ne.s32.totalorder %s26, %s29
      %p38 = scmp.eq.s32.totalorder %s21, 2
      %p39 = por %p37, %p38
      %p40 = scmp.ne.s32.totalorder %s29, %s30
      %p41 = scmp.eq.s32.totalorder %s21, 0
      %p42 = por %p40, %p41
      %p43 = scmp.ne.s32.totalorder %s29, %s30
      %p44 = scmp.eq.s32.totalorder %s22, 2
      %p45 = por %p43, %p44
      %p47 = scmp.ne.s32.totalorder %s30, %s46
      %p48 = scmp.eq.s32.totalorder %s22, 0
      %p49 = por %p47, %p48
      %s51 = sadd.s32 %s50, 1
      %p54 = scmp.eq.s32.totalorder %s16, 2
      %p55 = scmp.ne.s32.totalorder %s50, %s52
      %p56 = scmp.eq.s32.totalorder %s16, 0
      %p57 = por %p55, %p56
      %p58 = scmp.ne.s32.totalorder %s50, %s52
      %p59 = scmp.eq.s32.totalorder %s21, 2
      %p60 = por %p58, %p59
      %p61 = scmp.ne.s32.totalorder %s52, %s53
      %p62 = scmp.eq.s32.totalorder %s21, 0
      %p63 = por %p61, %p62
      %p64 = scmp.ne.s32.totalorder %s52, %s53
      %p65 = scmp.eq.s32.totalorder %s22, 2
      %p66 = por %p64, %p65
      %p68 = scmp.ne.s32.totalorder %s53, %s67
      %p69 = scmp.eq.s32.totalorder %s22, 0
      %p70 = por %p68, %p69
      %s72 = sadd.s32 %s71, 1
      %p75 = scmp.eq.s32.totalorder %s16, 2
      %p76 = scmp.ne.s32.totalorder %s71, %s73
      %p77 = scmp.eq.s32.totalorder %s16, 0
      %p78 = por %p76, %p77
      %p79 = scmp.ne.s32.totalorder %s71, %s73
      %p80 = scmp.eq.s32.totalorder %s21, 2
      %p81 = por %p79, %p80
      %p82 = scmp.ne.s32.totalorder %s73, %s74
      %p83 = scmp.eq.s32.totalorder %s21, 0
      %p84 = por %p82, %p83
      %p85 = scmp.ne.s32.totalorder %s73, %s74
      %p86 = scmp.eq.s32.totalorder %s22, 2
      %p87 = por %p85, %p86
      %p89 = scmp.ne.s32.totalorder %s74, %s88
      %p90 = scmp.eq.s32.totalorder %s22, 0
      %p91 = por %p89, %p90
      %s93 = sadd.s32 %s92, 1
      %p96 = scmp.eq.s32.totalorder %s16, 2
      %p97 = scmp.ne.s32.totalorder %s92, %s94
      %p98 = scmp.eq.s32.totalorder %s16, 0
      %p99 = por %p97, %p98
      %p100 = scmp.ne.s32.totalorder %s92, %s94
      %p101 = scmp.eq.s32.totalorder %s21, 2
      %p102 = por %p100, %p101
      %p103 = scmp.ne.s32.totalorder %s94, %s95
      %p104 = scmp.eq.s32.totalorder %s21, 0
      %p105 = por %p103, %p104
      %p106 = scmp.ne.s32.totalorder %s94, %s95
      %p107 = scmp.eq.s32.totalorder %s22, 2
      %p108 = por %p106, %p107
      %p110 = scmp.ne.s32.totalorder %s95, %s109
      %p111 = scmp.eq.s32.totalorder %s22, 0
      %p112 = por %p110, %p111
      %s114 = sadd.s32 %s113, 1
      %p117 = scmp.eq.s32.totalorder %s16, 2
      %p118 = scmp.ne.s32.totalorder %s113, %s115
      %p119 = scmp.eq.s32.totalorder %s16, 0
      %p120 = por %p118, %p119
      %p121 = scmp.ne.s32.totalorder %s113, %s115
      %p122 = scmp.eq.s32.totalorder %s21, 2
      %p123 = por %p121, %p122
      %p124 = scmp.ne.s32.totalorder %s115, %s116
      %p125 = scmp.eq.s32.totalorder %s21, 0
      %p126 = por %p124, %p125
      %p127 = scmp.ne.s32.totalorder %s115, %s116
      %p128 = scmp.eq.s32.totalorder %s22, 2
      %p129 = por %p127, %p128
      %p131 = scmp.ne.s32.totalorder %s116, %s130
      %p132 = scmp.eq.s32.totalorder %s22, 0
      %p133 = por %p131, %p132
      %s135 = sadd.s32 %s134, 1
      %p138 = scmp.eq.s32.totalorder %s16, 2
      %p139 = scmp.ne.s32.totalorder %s134, %s136
      %p140 = scmp.eq.s32.totalorder %s16, 0
      %p141 = por %p139, %p140
      %p142 = scmp.ne.s32.totalorder %s134, %s136
      %p143 = scmp.eq.s32.totalorder %s21, 2
      %p144 = por %p142, %p143
      %p145 = scmp.ne.s32.totalorder %s136, %s137
      %p146 = scmp.eq.s32.totalorder %s21, 0
      %p147 = por %p145, %p146
      %p148 = scmp.ne.s32.totalorder %s136, %s137
      %p149 = scmp.eq.s32.totalorder %s22, 2
      %p150 = por %p148, %p149
      %p152 = scmp.ne.s32.totalorder %s137, %s151
      %p153 = scmp.eq.s32.totalorder %s22, 0
      %p154 = por %p152, %p153
      %s156 = sadd.s32 %s155, 1
      %p159 = scmp.eq.s32.totalorder %s16, 2
      %p160 = scmp.ne.s32.totalorder %s155, %s157
      %p161 = scmp.eq.s32.totalorder %s16, 0
      %p162 = por %p160, %p161
      %p163 = scmp.ne.s32.totalorder %s155, %s157
      %p164 = scmp.eq.s32.totalorder %s21, 2
      %p165 = por %p163, %p164
      %p166 = scmp.ne.s32.totalorder %s157, %s158
      %p167 = scmp.eq.s32.totalorder %s21, 0
      %p168 = por %p166, %p167
      %p169 = scmp.ne.s32.totalorder %s157, %s158
      %p170 = scmp.eq.s32.totalorder %s22, 2
      %p171 = por %p169, %p170
      %p173 = scmp.ne.s32.totalorder %s158, %s172
      %p174 = scmp.eq.s32.totalorder %s22, 0
      %p175 = por %p173, %p174
      %s176 = ssub.s32 %s16, %s23
      %p177 = scmp.eq.s32.totalorder %s176, 0
      %s179 = sadd.s32 %s178, 1
      %s180 = scalar_select %p177, %s178, %s179
      %p183 = pneg %p177
      %p184 = scmp.eq.s32.totalorder %s16, 2
      %p185 = por %p183, %p184
      %p186 = scmp.ne.s32.totalorder %s178, %s181
      %p187 = scmp.eq.s32.totalorder %s16, 0
      %p188 = por %p186, %p187
      %p189 = scmp.ne.s32.totalorder %s178, %s181
      %p190 = scmp.eq.s32.totalorder %s21, 2
      %p191 = por %p189, %p190
      %p192 = scmp.ne.s32.totalorder %s181, %s182
      %p193 = scmp.eq.s32.totalorder %s21, 0
      %p194 = por %p192, %p193
      %p195 = scmp.ne.s32.totalorder %s181, %s182
      %p196 = scmp.eq.s32.totalorder %s22, 2
      %p197 = por %p195, %p196
      %p199 = scmp.ne.s32.totalorder %s182, %s198
      %p200 = scmp.eq.s32.totalorder %s22, 0
      %p201 = por %p199, %p200
      %p202 = scmp.le.s32.totalorder 1, %s16
      %p203 = scmp.lt.s32.totalorder %s16, 4
      %p204 = pnand %p202, %p203
      %p205 = pneg %p204
      // Predicated region
      $region9: #{tpu_custom_call.1} parent=5 // pred_check
        _
      $region10: #{tpu_custom_call.1} parent=5 // pred_check_branch
        %207 = sbr.rel (%p204) target = $region12
      $region11: #{tpu_custom_call.1} parent=5 // pred_region
        %s208 = ssub.s32 %s16, 1
        // Predicated region
        $region13: #{tpu_custom_call.1} parent=11 // pred_check
          %p209 = pneg %p63
        $region14: #{tpu_custom_call.1} parent=11 // pred_check_branch
          %211 = sbr.rel (%p209) target = $region16
        $region15: #{tpu_custom_call.1} parent=11 // pred_region
          _
        $region16: #{tpu_custom_call.1} parent=11 // pred_fallthru
          _
        // Predicated region
        $region17: #{tpu_custom_call.1} parent=11 // pred_check
          %p212 = pneg %p84
        $region18: #{tpu_custom_call.1} parent=11 // pred_check_branch
          %214 = sbr.rel (%p212) target = $region20
        $region19: #{tpu_custom_call.1} parent=11 // pred_region
          _
        $region20: #{tpu_custom_call.1} parent=11 // pred_fallthru
          _
        // Predicated region
        $region21: #{tpu_custom_call.1} parent=11 // pred_check
          %p215 = pneg %p105
        $region22: #{tpu_custom_call.1} parent=11 // pred_check_branch
          %217 = sbr.rel (%p215) target = $region24
        $region23: #{tpu_custom_call.1} parent=11 // pred_region
          _
        $region24: #{tpu_custom_call.1} parent=11 // pred_fallthru
          _
        // Predicated region
        $region25: #{tpu_custom_call.1} parent=11 // pred_check
          %p218 = pneg %p126
        $region26: #{tpu_custom_call.1} parent=11 // pred_check_branch
          %220 = sbr.rel (%p218) target = $region28
        $region27: #{tpu_custom_call.1} parent=11 // pred_region
          _
        $region28: #{tpu_custom_call.1} parent=11 // pred_fallthru
          _
        // Predicated region
        $region29: #{tpu_custom_call.1} parent=11 // pred_check
          %p221 = pneg %p147
        $region30: #{tpu_custom_call.1} parent=11 // pred_check_branch
          %223 = sbr.rel (%p221) target = $region32
        $region31: #{tpu_custom_call.1} parent=11 // pred_region
          _
        $region32: #{tpu_custom_call.1} parent=11 // pred_fallthru
          _
        // Predicated region
        $region33: #{tpu_custom_call.1} parent=11 // pred_check
          %p224 = pneg %p168
        $region34: #{tpu_custom_call.1} parent=11 // pred_check_branch
          %226 = sbr.rel (%p224) target = $region36
        $region35: #{tpu_custom_call.1} parent=11 // pred_region
          _
        $region36: #{tpu_custom_call.1} parent=11 // pred_fallthru
          _
      $region12: #{tpu_custom_call.1} parent=5 // pred_fallthru
        _
      %p227 = scmp.lt.s32.totalorder %s16, 3
      // Predicated region
      $region37: #{tpu_custom_call.1} parent=5 // pred_check
        %p228 = pneg %p227
      $region38: #{tpu_custom_call.1} parent=5 // pred_check_branch
        %230 = sbr.rel (%p228) target = $region40
      $region39: #{tpu_custom_call.1} parent=5 // pred_region
        // Predicated region
        $region41: #{tpu_custom_call.1} parent=39 // pred_check
          %p231 = pneg %p36
        $region42: #{tpu_custom_call.1} parent=39 // pred_check_branch
          %233 = sbr.rel (%p231) target = $region44
        $region43: #{tpu_custom_call.1} parent=39 // pred_region
          %s234 = smul.u32 32, %s16
          %s235 = ssub.s32 75, %s234
          %p236 = scmp.lt.s32.totalorder %s235, 32
          %s237 = scalar_select %p236, %s235, 32
          %s238 = smul.u32 128, %s237
          %p239 = scmp.lt.s32.totalorder %s234, 74
          %s240 = scalar_select %p239, %s234, 74
          %s241 = smul.addr %s240, 8
          %s242 = scalar_lea.vmem %s0, %s241
          %s243 = smul.u32 32, %s16
          %s244 = ssub.s32 75, %s243
          %p245 = scmp.lt.s32.totalorder %s244, 32
          %s246 = scalar_select %p245, %s244, 32
          %s247 = smul.u32 128, %s246
        $region44: #{tpu_custom_call.1} parent=39 // pred_fallthru
          _
      $region40: #{tpu_custom_call.1} parent=5 // pred_fallthru
        _
      %p248 = scmp.le.s32.totalorder 1, %s16
      %p249 = scmp.lt.s32.totalorder %s16, 4
      %p250 = pnand %p248, %p249
      %p251 = pneg %p250
      // Predicated region
      $region45: #{tpu_custom_call.1} parent=5 // pred_check
        _
      $region46: #{tpu_custom_call.1} parent=5 // pred_check_branch
        %253 = sbr.rel (%p250) target = $region48
      $region47: #{tpu_custom_call.1} parent=5 // pred_region
        %s254 = ssub.s32 %s16, 1
        %s255 = smul.u32 32, %s21
        %s256 = ssub.s32 75, %s255
        %p257 = scmp.lt.s32.totalorder %s256, 32
        %s258 = scalar_select %p257, %s256, 32
        %s259 = smul.u32 128, %s258
        %p260 = scmp.lt.s32.totalorder %s255, 74
        %s261 = scalar_select %p260, %s255, 74
        %s262 = smul.addr %s261, 8
        %s263 = scalar_lea.vmem %s0, %s262
        %p264 = pneg %p42
        %p265 = pneg %p39
        %p266 = pneg %p63
        %p267 = pneg %p60
        %p268 = pneg %p84
        %p269 = pneg %p81
        %p270 = pneg %p105
        %p271 = pneg %p102
        %p272 = pneg %p126
        %p273 = pneg %p123
        %p274 = pneg %p147
        %p275 = pneg %p144
        %p276 = pneg %p168
        %p277 = pneg %p165
        %p278 = pneg %p194
        %p279 = pneg %p191
        %s280 = sand.u32 %s181, 1
        %s281 = scalar_lea.sflag [#allocation3], %s280
        %s282 = sand.u32 %s181, 1
        %s283 = smul.addr %s282, 4
        %s284 = scalar_lea.vmem [#allocation2], %s283
        %s285 = smul.u32 32, %s21
        %s286 = ssub.s32 75, %s285
        %p287 = scmp.lt.s32.totalorder %s286, 32
        %s288 = scalar_select %p287, %s286, 32
        %s289 = smul.u32 128, %s288
        %p290 = scmp.lt.s32.totalorder %s285, 74
        %s291 = scalar_select %p290, %s285, 74
        %s292 = smul.addr %s291, 8
        %s293 = scalar_lea.vmem %s0, %s292
        %s294 = smul.u32 32, %s21
        %s295 = ssub.s32 75, %s294
        %p296 = scmp.lt.s32.totalorder %s295, 32
        %s297 = scalar_select %p296, %s295, 32
        %s298 = smul.u32 128, %s297
        %s299 = smul.u32 2, %s21
        %s300 = ssub.s32 5, %s299
        %p301 = scmp.lt.s32.totalorder %s300, 2
        %s302 = scalar_select %p301, %s300, 2
        %s303 = smul.u32 32, %s302
        %v304 = vld [vmem:[%s293] sm:$0xff]
        %v305 = vld [vmem:[%s293 + $0x8] sm:$0xff]
        %v306 = vld [vmem:[%s293 + $0x10] sm:$0xff]
        %v307 = vld [vmem:[%s293 + $0x18] sm:$0xff]
        %v308 = vld [vmem:[%s293 + $0x20] sm:$0xff]
        %v309 = vld [vmem:[%s293 + $0x28] sm:$0xff]
        %v310 = vld [vmem:[%s293 + $0x30] sm:$0xff]
        %v311 = vld [vmem:[%s293 + $0x38] sm:$0xff]
        %v312 = vld [vmem:[%s293 + $0x40] sm:$0xff]
        %v313 = vld [vmem:[%s293 + $0x48] sm:$0xff]
        %v314 = vld [vmem:[%s293 + $0x50] sm:$0xff]
        %v315 = vld [vmem:[%s293 + $0x58] sm:$0xff]
        %v316 = vld [vmem:[%s293 + $0x60] sm:$0xff]
        %v317 = vld [vmem:[%s293 + $0x68] sm:$0xff]
        %v318 = vld [vmem:[%s293 + $0x70] sm:$0xff]
        %v319 = vld [vmem:[%s293 + $0x78] sm:$0xff]
        %v320 = vld [vmem:[%s293 + $0x80] sm:$0xff]
        %v321 = vld [vmem:[%s293 + $0x88] sm:$0xff]
        %v322 = vld [vmem:[%s293 + $0x90] sm:$0xff]
        %v323 = vld [vmem:[%s293 + $0x98] sm:$0xff]
        %v324 = vld [vmem:[%s293 + $0xa0] sm:$0xff]
        %v325 = vld [vmem:[%s293 + $0xa8] sm:$0xff]
        %v326 = vld [vmem:[%s293 + $0xb0] sm:$0xff]
        %v327 = vld [vmem:[%s293 + $0xb8] sm:$0xff]
        %v328 = vld [vmem:[%s293 + $0xc0] sm:$0xff]
        %v329 = vld [vmem:[%s293 + $0xc8] sm:$0xff]
        %v330 = vld [vmem:[%s293 + $0xd0] sm:$0xff]
        %v331 = vld [vmem:[%s293 + $0xd8] sm:$0xff]
        %v332 = vld [vmem:[%s293 + $0xe0] sm:$0xff]
        %v333 = vld [vmem:[%s293 + $0xe8] sm:$0xff]
        %v334 = vld [vmem:[%s293 + $0xf0] sm:$0xff]
        %v335 = vld [vmem:[%s293 + $0xf8] sm:$0xff]
        %v336 = vld [vmem:[%s1] sm:$0xff]
        %v337 = vld [vmem:[%s1 + $0x8] sm:$0xff]
        %v338 = vld [vmem:[%s1 + $0x10] sm:$0xff]
        %v339 = vld [vmem:[%s1 + $0x18] sm:$0xff]
        %v340 = vld [vmem:[%s1 + $0x20] sm:$0xff]
        %v341 = vld [vmem:[%s1 + $0x28] sm:$0xff]
        %v342 = vld [vmem:[%s1 + $0x30] sm:$0xff]
        %v343 = vld [vmem:[%s1 + $0x38] sm:$0xff]
        %v344 = vld [vmem:[%s1 + $0x40] sm:$0xff]
        %v345 = vld [vmem:[%s1 + $0x48] sm:$0xff]
        %v346 = vld [vmem:[%s1 + $0x50] sm:$0xff]
        %v347 = vld [vmem:[%s1 + $0x58] sm:$0xff]
        %v348 = vld [vmem:[%s1 + $0x60] sm:$0xff]
        %v349 = vld [vmem:[%s1 + $0x68] sm:$0xff]
        %v350 = vld [vmem:[%s1 + $0x70] sm:$0xff]
        %v351 = vld [vmem:[%s1 + $0x78] sm:$0xff]
        %v352 = vld [vmem:[%s2] sm:$0xff]
        %v353 = vld [vmem:[%s2 + $0x8] sm:$0xff]
        %v354 = vld [vmem:[%s2 + $0x10] sm:$0xff]
        %v355 = vld [vmem:[%s2 + $0x18] sm:$0xff]
        %v356 = vld [vmem:[%s2 + $0x20] sm:$0xff]
        %v357 = vld [vmem:[%s2 + $0x28] sm:$0xff]
        %v358 = vld [vmem:[%s2 + $0x30] sm:$0xff]
        %v359 = vld [vmem:[%s2 + $0x38] sm:$0xff]
        %v360 = vld [vmem:[%s2 + $0x40] sm:$0xff]
        %v361 = vld [vmem:[%s2 + $0x48] sm:$0xff]
        %v362 = vld [vmem:[%s2 + $0x50] sm:$0xff]
        %v363 = vld [vmem:[%s2 + $0x58] sm:$0xff]
        %v364 = vld [vmem:[%s2 + $0x60] sm:$0xff]
        %v365 = vld [vmem:[%s2 + $0x68] sm:$0xff]
        %v366 = vld [vmem:[%s2 + $0x70] sm:$0xff]
        %v367 = vld [vmem:[%s2 + $0x78] sm:$0xff]
        %369 = vset.pattern.permute.xlu0 0
        %370 = vperm.xlu0 %369, %v352
        %v371 = vpop.permute.xlu0 %370
        %374 = vset.pattern.permute.xlu0 0
        %375 = vperm.xlu0 %374, %v353
        %v376 = vpop.permute.xlu0 %375
        %379 = vset.pattern.permute.xlu0 0
        %380 = vperm.xlu0 %379, %v354
        %v381 = vpop.permute.xlu0 %380
        %384 = vset.pattern.permute.xlu0 0
        %385 = vperm.xlu0 %384, %v355
        %v386 = vpop.permute.xlu0 %385
        %389 = vset.pattern.permute.xlu0 0
        %390 = vperm.xlu0 %389, %v356
        %v391 = vpop.permute.xlu0 %390
        %394 = vset.pattern.permute.xlu0 0
        %395 = vperm.xlu0 %394, %v357
        %v396 = vpop.permute.xlu0 %395
        %399 = vset.pattern.permute.xlu0 0
        %400 = vperm.xlu0 %399, %v358
        %v401 = vpop.permute.xlu0 %400
        %404 = vset.pattern.permute.xlu0 0
        %405 = vperm.xlu0 %404, %v359
        %v406 = vpop.permute.xlu0 %405
        %409 = vset.pattern.permute.xlu0 0
        %410 = vperm.xlu0 %409, %v360
        %v411 = vpop.permute.xlu0 %410
        %414 = vset.pattern.permute.xlu0 0
        %415 = vperm.xlu0 %414, %v361
        %v416 = vpop.permute.xlu0 %415
        %419 = vset.pattern.permute.xlu0 0
        %420 = vperm.xlu0 %419, %v362
        %v421 = vpop.permute.xlu0 %420
        %424 = vset.pattern.permute.xlu0 0
        %425 = vperm.xlu0 %424, %v363
        %v426 = vpop.permute.xlu0 %425
        %429 = vset.pattern.permute.xlu0 0
        %430 = vperm.xlu0 %429, %v364
        %v431 = vpop.permute.xlu0 %430
        %434 = vset.pattern.permute.xlu0 0
        %435 = vperm.xlu0 %434, %v365
        %v436 = vpop.permute.xlu0 %435
        %439 = vset.pattern.permute.xlu0 0
        %440 = vperm.xlu0 %439, %v366
        %v441 = vpop.permute.xlu0 %440
        %444 = vset.pattern.permute.xlu0 0
        %445 = vperm.xlu0 %444, %v367
        %v446 = vpop.permute.xlu0 %445
        %vm448 = vcmask 64512
        %v450 = vsel %vm448, %v336, 0
        %v453 = vsel %vm448, %v337, 0
        %v456 = vsel %vm448, %v338, 0
        %v459 = vsel %vm448, %v339, 0
        %v462 = vsel %vm448, %v340, 0
        %v465 = vsel %vm448, %v341, 0
        %v468 = vsel %vm448, %v342, 0
        %v471 = vsel %vm448, %v343, 0
        %v474 = vsel %vm448, %v344, 0
        %v477 = vsel %vm448, %v345, 0
        %v480 = vsel %vm448, %v346, 0
        %v483 = vsel %vm448, %v347, 0
        %v486 = vsel %vm448, %v348, 0
        %v489 = vsel %vm448, %v349, 0
        %v492 = vsel %vm448, %v350, 0
        %v495 = vsel %vm448, %v351, 0
        %v498 = vsel %vm448, %v304, 0
        %v501 = vsel %vm448, %v305, 0
        %v504 = vsel %vm448, %v306, 0
        %v507 = vsel %vm448, %v307, 0
        %v510 = vsel %vm448, %v308, 0
        %v513 = vsel %vm448, %v309, 0
        %v516 = vsel %vm448, %v310, 0
        %v519 = vsel %vm448, %v311, 0
        %v522 = vsel %vm448, %v312, 0
        %v525 = vsel %vm448, %v313, 0
        %v528 = vsel %vm448, %v314, 0
        %v531 = vsel %vm448, %v315, 0
        %v534 = vsel %vm448, %v316, 0
        %v537 = vsel %vm448, %v317, 0
        %v540 = vsel %vm448, %v318, 0
        %v543 = vsel %vm448, %v319, 0
        %v546 = vsel %vm448, %v320, 0
        %v549 = vsel %vm448, %v321, 0
        %v552 = vsel %vm448, %v322, 0
        %v555 = vsel %vm448, %v323, 0
        %v558 = vsel %vm448, %v324, 0
        %v561 = vsel %vm448, %v325, 0
        %v564 = vsel %vm448, %v326, 0
        %v567 = vsel %vm448, %v327, 0
        %v570 = vsel %vm448, %v328, 0
        %v573 = vsel %vm448, %v329, 0
        %v576 = vsel %vm448, %v330, 0
        %v579 = vsel %vm448, %v331, 0
        %v582 = vsel %vm448, %v332, 0
        %v585 = vsel %vm448, %v333, 0
        %v588 = vsel %vm448, %v334, 0
        %v591 = vsel %vm448, %v335, 0
        %593 = vmatprep.subr.mxu0 0.0
        %594 = vmatpush1.xpose.msra.mxu0 %v498
        %595 = vmatprep.subr.mxu0 0.0
        %596 = vmatpush1.xpose.msra.mxu0 %v501
        %597 = vmatprep.subr.mxu0 0.0
        %598 = vmatpush1.xpose.msra.mxu0 %v504
        %599 = vmatprep.subr.mxu0 0.0
        %600 = vmatpush1.xpose.msra.mxu0 %v507
        %601 = vmatprep.subr.mxu0 0.0
        %602 = vmatpush1.xpose.msra.mxu0 %v510
        %603 = vmatprep.subr.mxu0 0.0
        %604 = vmatpush1.xpose.msra.mxu0 %v513
        %605 = vmatprep.subr.mxu0 0.0
        %606 = vmatpush1.xpose.msra.mxu0 %v516
        %607 = vmatprep.subr.mxu0 0.0
        %608 = vmatpush1.xpose.msra.mxu0 %v519
        %609 = vmatprep.subr.mxu0 0.0
        %610 = vmatpush1.xpose.msra.mxu0 %v522
        %611 = vmatprep.subr.mxu0 0.0
        %612 = vmatpush1.xpose.msra.mxu0 %v525
        %613 = vmatprep.subr.mxu0 0.0
        %614 = vmatpush1.xpose.msra.mxu0 %v528
        %615 = vmatprep.subr.mxu0 0.0
        %616 = vmatpush1.xpose.msra.mxu0 %v531
        %617 = vmatprep.subr.mxu0 0.0
        %618 = vmatpush1.xpose.msra.mxu0 %v534
        %619 = vmatprep.subr.mxu0 0.0
        %620 = vmatpush1.xpose.msra.mxu0 %v537
        %621 = vmatprep.subr.mxu0 0.0
        %622 = vmatpush1.xpose.msra.mxu0 %v540
        %623 = vmatprep.subr.mxu0 0.0
        %624 = vmatpush1.xpose.msra.mxu0 %v543
        %625 = vmatprep.subr.mxu0 0.0
        %626 = vmatpush1.xpose.msra.mxu0 %v546
        %627 = vmatprep.subr.mxu0 0.0
        %628 = vmatpush1.xpose.msra.mxu0 %v549
        %629 = vmatprep.subr.mxu0 0.0
        %630 = vmatpush1.xpose.msra.mxu0 %v552
        %631 = vmatprep.subr.mxu0 0.0
        %632 = vmatpush1.xpose.msra.mxu0 %v555
        %633 = vmatprep.subr.mxu0 0.0
        %634 = vmatpush1.xpose.msra.mxu0 %v558
        %635 = vmatprep.subr.mxu0 0.0
        %636 = vmatpush1.xpose.msra.mxu0 %v561
        %637 = vmatprep.subr.mxu0 0.0
        %638 = vmatpush1.xpose.msra.mxu0 %v564
        %639 = vmatprep.subr.mxu0 0.0
        %640 = vmatpush1.xpose.msra.mxu0 %v567
        %641 = vmatprep.subr.mxu0 0.0
        %642 = vmatpush1.xpose.msra.mxu0 %v570
        %643 = vmatprep.subr.mxu0 0.0
        %644 = vmatpush1.xpose.msra.mxu0 %v573
        %645 = vmatprep.subr.mxu0 0.0
        %646 = vmatpush1.xpose.msra.mxu0 %v576
        %647 = vmatprep.subr.mxu0 0.0
        %648 = vmatpush1.xpose.msra.mxu0 %v579
        %649 = vmatprep.subr.mxu0 0.0
        %650 = vmatpush1.xpose.msra.mxu0 %v582
        %651 = vmatprep.subr.mxu0 0.0
        %652 = vmatpush1.xpose.msra.mxu0 %v585
        %653 = vmatprep.subr.mxu0 0.0
        %654 = vmatpush1.xpose.msra.mxu0 %v588
        %655 = vmatprep.subr.mxu0 0.0
        %656 = vmatpush1.xpose.msra.mxu0 %v591
        %657 = vmatprep.mubr.f32.mxu0 0.0
        %658 = vmatmul.mubr.f32.gmra.mrb[0].mxu0 %v450
        %v659 = vpop.f32.mrb[0].mxu0
        %v660 = vadd.f32 %v371, %v659
        %v661 = vpop.f32.mrb[0].mxu0
        %v662 = vadd.f32 %v371, %v661
        %663 = vmatprep.mubr.f32.mxu0 0.0
        %664 = vmatmul.mubr.f32.gmra.mrb[0].mxu0 %v453
        %v665 = vpop.f32.mrb[0].mxu0
        %v666 = vadd.f32 %v376, %v665
        %v667 = vpop.f32.mrb[0].mxu0
        %v668 = vadd.f32 %v376, %v667
        %669 = vmatprep.mubr.f32.mxu0 0.0
        %670 = vmatmul.mubr.f32.gmra.mrb[0].mxu0 %v456
        %v671 = vpop.f32.mrb[0].mxu0
        %v672 = vadd.f32 %v381, %v671
        %v673 = vpop.f32.mrb[0].mxu0
        %v674 = vadd.f32 %v381, %v673
        %675 = vmatprep.mubr.f32.mxu0 0.0
        %676 = vmatmul.mubr.f32.gmra.mrb[0].mxu0 %v459
        %v677 = vpop.f32.mrb[0].mxu0
        %v678 = vadd.f32 %v386, %v677
        %v679 = vpop.f32.mrb[0].mxu0
        %v680 = vadd.f32 %v386, %v679
        %681 = vmatprep.mubr.f32.mxu0 0.0
        %682 = vmatmul.mubr.f32.gmra.mrb[0].mxu0 %v462
        %v683 = vpop.f32.mrb[0].mxu0
        %v684 = vadd.f32 %v391, %v683
        %v685 = vpop.f32.mrb[0].mxu0
        %v686 = vadd.f32 %v391, %v685
        %687 = vmatprep.mubr.f32.mxu0 0.0
        %688 = vmatmul.mubr.f32.gmra.mrb[0].mxu0 %v465
        %v689 = vpop.f32.mrb[0].mxu0
        %v690 = vadd.f32 %v396, %v689
        %v691 = vpop.f32.mrb[0].mxu0
        %v692 = vadd.f32 %v396, %v691
        %693 = vmatprep.mubr.f32.mxu0 0.0
        %694 = vmatmul.mubr.f32.gmra.mrb[0].mxu0 %v468
        %v695 = vpop.f32.mrb[0].mxu0
        %v696 = vadd.f32 %v401, %v695
        %v697 = vpop.f32.mrb[0].mxu0
        %v698 = vadd.f32 %v401, %v697
        %699 = vmatprep.mubr.f32.mxu0 0.0
        %700 = vmatmul.mubr.f32.gmra.mrb[0].mxu0 %v471
        %v701 = vpop.f32.mrb[0].mxu0
        %v702 = vadd.f32 %v406, %v701
        %v703 = vpop.f32.mrb[0].mxu0
        %v704 = vadd.f32 %v406, %v703
        %705 = vmatprep.mubr.f32.mxu0 0.0
        %706 = vmatmul.mubr.f32.gmra.mrb[0].mxu0 %v474
        %v707 = vpop.f32.mrb[0].mxu0
        %v708 = vadd.f32 %v411, %v707
        %v709 = vpop.f32.mrb[0].mxu0
        %v710 = vadd.f32 %v411, %v709
        %711 = vmatprep.mubr.f32.mxu0 0.0
        %712 = vmatmul.mubr.f32.gmra.mrb[0].mxu0 %v477
        %v713 = vpop.f32.mrb[0].mxu0
        %v714 = vadd.f32 %v416, %v713
        %v715 = vpop.f32.mrb[0].mxu0
        %v716 = vadd.f32 %v416, %v715
        %717 = vmatprep.mubr.f32.mxu0 0.0
        %718 = vmatmul.mubr.f32.gmra.mrb[0].mxu0 %v480
        %v719 = vpop.f32.mrb[0].mxu0
        %v720 = vadd.f32 %v421, %v719
        %v721 = vpop.f32.mrb[0].mxu0
        %v722 = vadd.f32 %v421, %v721
        %723 = vmatprep.mubr.f32.mxu0 0.0
        %724 = vmatmul.mubr.f32.gmra.mrb[0].mxu0 %v483
        %v725 = vpop.f32.mrb[0].mxu0
        %v726 = vadd.f32 %v426, %v725
        %v727 = vpop.f32.mrb[0].mxu0
        %v728 = vadd.f32 %v426, %v727
        %729 = vmatprep.mubr.f32.mxu0 0.0
        %730 = vmatmul.mubr.f32.gmra.mrb[0].mxu0 %v486
        %v731 = vpop.f32.mrb[0].mxu0
        %v732 = vadd.f32 %v431, %v731
        %v733 = vpop.f32.mrb[0].mxu0
        %v734 = vadd.f32 %v431, %v733
        %735 = vmatprep.mubr.f32.mxu0 0.0
        %736 = vmatmul.mubr.f32.gmra.mrb[0].mxu0 %v489
        %v737 = vpop.f32.mrb[0].mxu0
        %v738 = vadd.f32 %v436, %v737
        %v739 = vpop.f32.mrb[0].mxu0
        %v740 = vadd.f32 %v436, %v739
        %741 = vmatprep.mubr.f32.mxu0 0.0
        %742 = vmatmul.mubr.f32.gmra.mrb[0].mxu0 %v492
        %v743 = vpop.f32.mrb[0].mxu0
        %v744 = vadd.f32 %v441, %v743
        %v745 = vpop.f32.mrb[0].mxu0
        %v746 = vadd.f32 %v441, %v745
        %747 = vmatprep.mubr.f32.mxu0 0.0
        %748 = vmatmul.mubr.f32.gmra.mrb[0].mxu0 %v495
        %v749 = vpop.f32.mrb[0].mxu0
        %v750 = vadd.f32 %v446, %v749
        %v751 = vpop.f32.mrb[0].mxu0
        %v752 = vadd.f32 %v446, %v751
        %753 = vdwg.mxu0
        %v754 = vmax.f32 %v660, 0.0
        %v755 = vmax.f32 %v662, 0.0
        %v756 = vmax.f32 %v666, 0.0
        %v757 = vmax.f32 %v668, 0.0
        %v758 = vmax.f32 %v672, 0.0
        %v759 = vmax.f32 %v674, 0.0
        %v760 = vmax.f32 %v678, 0.0
        %v761 = vmax.f32 %v680, 0.0
        %v762 = vmax.f32 %v684, 0.0
        %v763 = vmax.f32 %v686, 0.0
        %v764 = vmax.f32 %v690, 0.0
        %v765 = vmax.f32 %v692, 0.0
        %v766 = vmax.f32 %v696, 0.0
        %v767 = vmax.f32 %v698, 0.0
        %v768 = vmax.f32 %v702, 0.0
        %v769 = vmax.f32 %v704, 0.0
        %v770 = vmax.f32 %v708, 0.0
        %v771 = vmax.f32 %v710, 0.0
        %v772 = vmax.f32 %v714, 0.0
        %v773 = vmax.f32 %v716, 0.0
        %v774 = vmax.f32 %v720, 0.0
        %v775 = vmax.f32 %v722, 0.0
        %v776 = vmax.f32 %v726, 0.0
        %v777 = vmax.f32 %v728, 0.0
        %v778 = vmax.f32 %v732, 0.0
        %v779 = vmax.f32 %v734, 0.0
        %v780 = vmax.f32 %v738, 0.0
        %v781 = vmax.f32 %v740, 0.0
        %v782 = vmax.f32 %v744, 0.0
        %v783 = vmax.f32 %v746, 0.0
        %v784 = vmax.f32 %v750, 0.0
        %v785 = vmax.f32 %v752, 0.0
        %v786 = vld [vmem:[%s3] sm:$0xff]
        %v787 = vld [vmem:[%s3 + $0x8] sm:$0xff]
        %v788 = vld [vmem:[%s3 + $0x10] sm:$0xff]
        %v789 = vld [vmem:[%s3 + $0x18] sm:$0xff]
        %v790 = vld [vmem:[%s3 + $0x20] sm:$0xff]
        %v791 = vld [vmem:[%s3 + $0x28] sm:$0xff]
        %v792 = vld [vmem:[%s3 + $0x30] sm:$0xff]
        %v793 = vld [vmem:[%s3 + $0x38] sm:$0xff]
        %v794 = vld [vmem:[%s4] sm:$0xff]
        %v795 = vld [vmem:[%s4 + $0x8] sm:$0xff]
        %v796 = vld [vmem:[%s4 + $0x10] sm:$0xff]
        %v797 = vld [vmem:[%s4 + $0x18] sm:$0xff]
        %v798 = vld [vmem:[%s4 + $0x20] sm:$0xff]
        %v799 = vld [vmem:[%s4 + $0x28] sm:$0xff]
        %v800 = vld [vmem:[%s4 + $0x30] sm:$0xff]
        %v801 = vld [vmem:[%s4 + $0x38] sm:$0xff]
        %803 = vset.pattern.permute.xlu0 0
        %804 = vperm.xlu0 %803, %v794
        %v805 = vpop.permute.xlu0 %804
        %808 = vset.pattern.permute.xlu0 0
        %809 = vperm.xlu0 %808, %v795
        %v810 = vpop.permute.xlu0 %809
        %813 = vset.pattern.permute.xlu0 0
        %814 = vperm.xlu0 %813, %v796
        %v815 = vpop.permute.xlu0 %814
        %818 = vset.pattern.permute.xlu0 0
        %819 = vperm.xlu0 %818, %v797
        %v820 = vpop.permute.xlu0 %819
        %823 = vset.pattern.permute.xlu0 0
        %824 = vperm.xlu0 %823, %v798
        %v825 = vpop.permute.xlu0 %824
        %828 = vset.pattern.permute.xlu0 0
        %829 = vperm.xlu0 %828, %v799
        %v830 = vpop.permute.xlu0 %829
        %833 = vset.pattern.permute.xlu0 0
        %834 = vperm.xlu0 %833, %v800
        %v835 = vpop.permute.xlu0 %834
        %838 = vset.pattern.permute.xlu0 0
        %839 = vperm.xlu0 %838, %v801
        %v840 = vpop.permute.xlu0 %839
        %842 = vmatprep.subr.mxu0 %v755
        %843 = vmatpush1.msra.mxu0 %v754
        %844 = vmatprep.subr.mxu0 %v757
        %845 = vmatpush1.msra.mxu0 %v756
        %846 = vmatprep.subr.mxu0 %v759
        %847 = vmatpush1.msra.mxu0 %v758
        %848 = vmatprep.subr.mxu0 %v761
        %849 = vmatpush1.msra.mxu0 %v760
        %850 = vmatprep.subr.mxu0 %v763
        %851 = vmatpush1.msra.mxu0 %v762
        %852 = vmatprep.subr.mxu0 %v765
        %853 = vmatpush1.msra.mxu0 %v764
        %854 = vmatprep.subr.mxu0 %v767
        %855 = vmatpush1.msra.mxu0 %v766
        %856 = vmatprep.subr.mxu0 %v769
        %857 = vmatpush1.msra.mxu0 %v768
        %858 = vmatprep.subr.mxu0 %v771
        %859 = vmatpush1.msra.mxu0 %v770
        %860 = vmatprep.subr.mxu0 %v773
        %861 = vmatpush1.msra.mxu0 %v772
        %862 = vmatprep.subr.mxu0 %v775
        %863 = vmatpush1.msra.mxu0 %v774
        %864 = vmatprep.subr.mxu0 %v777
        %865 = vmatpush1.msra.mxu0 %v776
        %866 = vmatprep.subr.mxu0 %v779
        %867 = vmatpush1.msra.mxu0 %v778
        %868 = vmatprep.subr.mxu0 %v781
        %869 = vmatpush1.msra.mxu0 %v780
        %870 = vmatprep.subr.mxu0 %v783
        %871 = vmatpush1.msra.mxu0 %v782
        %872 = vmatprep.subr.mxu0 %v785
        %873 = vmatpush1.msra.mxu0 %v784
        %874 = vmatprep.subr.mxu0 0.0
        %875 = vmatpush1.msra.mxu0 0.0
        %876 = vmatprep.subr.mxu0 0.0
        %877 = vmatpush1.msra.mxu0 0.0
        %878 = vmatprep.subr.mxu0 0.0
        %879 = vmatpush1.msra.mxu0 0.0
        %880 = vmatprep.subr.mxu0 0.0
        %881 = vmatpush1.msra.mxu0 0.0
        %882 = vmatprep.subr.mxu0 0.0
        %883 = vmatpush1.msra.mxu0 0.0
        %884 = vmatprep.subr.mxu0 0.0
        %885 = vmatpush1.msra.mxu0 0.0
        %886 = vmatprep.subr.mxu0 0.0
        %887 = vmatpush1.msra.mxu0 0.0
        %888 = vmatprep.subr.mxu0 0.0
        %889 = vmatpush1.msra.mxu0 0.0
        %890 = vmatprep.subr.mxu0 0.0
        %891 = vmatpush1.msra.mxu0 0.0
        %892 = vmatprep.subr.mxu0 0.0
        %893 = vmatpush1.msra.mxu0 0.0
        %894 = vmatprep.subr.mxu0 0.0
        %895 = vmatpush1.msra.mxu0 0.0
        %896 = vmatprep.subr.mxu0 0.0
        %897 = vmatpush1.msra.mxu0 0.0
        %898 = vmatprep.subr.mxu0 0.0
        %899 = vmatpush1.msra.mxu0 0.0
        %900 = vmatprep.subr.mxu0 0.0
        %901 = vmatpush1.msra.mxu0 0.0
        %902 = vmatprep.subr.mxu0 0.0
        %903 = vmatpush1.msra.mxu0 0.0
        %904 = vmatprep.subr.mxu0 0.0
        %905 = vmatpush1.msra.mxu0 0.0
        %906 = vmatprep.mubr.f32.mxu0 0.0
        %907 = vmatmul.mubr.f32.gmra.mrb[0].mxu0 %v786
        %v908 = vpop.f32.mrb[0].mxu0
        %v909 = vadd.f32 %v805, %v908
        %v910 = vpop.f32.mrb[0].mxu0
        %v911 = vadd.f32 %v805, %v910
        %912 = vmatprep.mubr.f32.mxu0 0.0
        %913 = vmatmul.mubr.f32.gmra.mrb[0].mxu0 %v787
        %v914 = vpop.f32.mrb[0].mxu0
        %v915 = vadd.f32 %v810, %v914
        %v916 = vpop.f32.mrb[0].mxu0
        %v917 = vadd.f32 %v810, %v916
        %918 = vmatprep.mubr.f32.mxu0 0.0
        %919 = vmatmul.mubr.f32.gmra.mrb[0].mxu0 %v788
        %v920 = vpop.f32.mrb[0].mxu0
        %v921 = vadd.f32 %v815, %v920
        %v922 = vpop.f32.mrb[0].mxu0
        %v923 = vadd.f32 %v815, %v922
        %924 = vmatprep.mubr.f32.mxu0 0.0
        %925 = vmatmul.mubr.f32.gmra.mrb[0].mxu0 %v789
        %v926 = vpop.f32.mrb[0].mxu0
        %v927 = vadd.f32 %v820, %v926
        %v928 = vpop.f32.mrb[0].mxu0
        %v929 = vadd.f32 %v820, %v928
        %930 = vmatprep.mubr.f32.mxu0 0.0
        %931 = vmatmul.mubr.f32.gmra.mrb[0].mxu0 %v790
        %v932 = vpop.f32.mrb[0].mxu0
        %v933 = vadd.f32 %v825, %v932
        %v934 = vpop.f32.mrb[0].mxu0
        %v935 = vadd.f32 %v825, %v934
        %936 = vmatprep.mubr.f32.mxu0 0.0
        %937 = vmatmul.mubr.f32.gmra.mrb[0].mxu0 %v791
        %v938 = vpop.f32.mrb[0].mxu0
        %v939 = vadd.f32 %v830, %v938
        %v940 = vpop.f32.mrb[0].mxu0
        %v941 = vadd.f32 %v830, %v940
        %942 = vmatprep.mubr.f32.mxu0 0.0
        %943 = vmatmul.mubr.f32.gmra.mrb[0].mxu0 %v792
        %v944 = vpop.f32.mrb[0].mxu0
        %v945 = vadd.f32 %v835, %v944
        %v946 = vpop.f32.mrb[0].mxu0
        %v947 = vadd.f32 %v835, %v946
        %948 = vmatprep.mubr.f32.mxu0 0.0
        %949 = vmatmul.mubr.f32.gmra.mrb[0].mxu0 %v793
        %v950 = vpop.f32.mrb[0].mxu0
        %v951 = vadd.f32 %v840, %v950
        %v952 = vpop.f32.mrb[0].mxu0
        %v953 = vadd.f32 %v840, %v952
        %954 = vdwg.mxu0
        %v955 = vmax.f32 %v909, 0.0
        %v956 = vmax.f32 %v911, 0.0
        %v957 = vmax.f32 %v915, 0.0
        %v958 = vmax.f32 %v917, 0.0
        %v959 = vmax.f32 %v921, 0.0
        %v960 = vmax.f32 %v923, 0.0
        %v961 = vmax.f32 %v927, 0.0
        %v962 = vmax.f32 %v929, 0.0
        %v963 = vmax.f32 %v933, 0.0
        %v964 = vmax.f32 %v935, 0.0
        %v965 = vmax.f32 %v939, 0.0
        %v966 = vmax.f32 %v941, 0.0
        %v967 = vmax.f32 %v945, 0.0
        %v968 = vmax.f32 %v947, 0.0
        %v969 = vmax.f32 %v951, 0.0
        %v970 = vmax.f32 %v953, 0.0
        %v971 = vld [vmem:[%s5] sm:$0x3]
        %v972 = vld [vmem:[%s6] sm:$0x3]
        %974 = vset.pattern.permute.xlu0 0
        %975 = vperm.xlu0 %974, %v972
        %v976 = vpop.permute.xlu0 %975
        %vm978 = vcmask 523264
        %v980 = vsel %vm978, %v971, 0
        %982 = vmatprep.subr.mxu0 %v956
        %983 = vmatpush1.msra.mxu0 %v955
        %984 = vmatprep.subr.mxu0 %v958
        %985 = vmatpush1.msra.mxu0 %v957
        %986 = vmatprep.subr.mxu0 %v960
        %987 = vmatpush1.msra.mxu0 %v959
        %988 = vmatprep.subr.mxu0 %v962
        %989 = vmatpush1.msra.mxu0 %v961
        %990 = vmatprep.subr.mxu0 %v964
        %991 = vmatpush1.msra.mxu0 %v963
        %992 = vmatprep.subr.mxu0 %v966
        %993 = vmatpush1.msra.mxu0 %v965
        %994 = vmatprep.subr.mxu0 %v968
        %995 = vmatpush1.msra.mxu0 %v967
        %996 = vmatprep.subr.mxu0 %v970
        %997 = vmatpush1.msra.mxu0 %v969
        %998 = vmatprep.subr.mxu0 0.0
        %999 = vmatpush1.msra.mxu0 0.0
        %1000 = vmatprep.subr.mxu0 0.0
        %1001 = vmatpush1.msra.mxu0 0.0
        %1002 = vmatprep.subr.mxu0 0.0
        %1003 = vmatpush1.msra.mxu0 0.0
        %1004 = vmatprep.subr.mxu0 0.0
        %1005 = vmatpush1.msra.mxu0 0.0
        %1006 = vmatprep.subr.mxu0 0.0
        %1007 = vmatpush1.msra.mxu0 0.0
        %1008 = vmatprep.subr.mxu0 0.0
        %1009 = vmatpush1.msra.mxu0 0.0
        %1010 = vmatprep.subr.mxu0 0.0
        %1011 = vmatpush1.msra.mxu0 0.0
        %1012 = vmatprep.subr.mxu0 0.0
        %1013 = vmatpush1.msra.mxu0 0.0
        %1014 = vmatprep.subr.mxu0 0.0
        %1015 = vmatpush1.msra.mxu0 0.0
        %1016 = vmatprep.subr.mxu0 0.0
        %1017 = vmatpush1.msra.mxu0 0.0
        %1018 = vmatprep.subr.mxu0 0.0
        %1019 = vmatpush1.msra.mxu0 0.0
        %1020 = vmatprep.subr.mxu0 0.0
        %1021 = vmatpush1.msra.mxu0 0.0
        %1022 = vmatprep.subr.mxu0 0.0
        %1023 = vmatpush1.msra.mxu0 0.0
        %1024 = vmatprep.subr.mxu0 0.0
        %1025 = vmatpush1.msra.mxu0 0.0
        %1026 = vmatprep.subr.mxu0 0.0
        %1027 = vmatpush1.msra.mxu0 0.0
        %1028 = vmatprep.subr.mxu0 0.0
        %1029 = vmatpush1.msra.mxu0 0.0
        %1030 = vmatprep.subr.mxu0 0.0
        %1031 = vmatpush1.msra.mxu0 0.0
        %1032 = vmatprep.subr.mxu0 0.0
        %1033 = vmatpush1.msra.mxu0 0.0
        %1034 = vmatprep.subr.mxu0 0.0
        %1035 = vmatpush1.msra.mxu0 0.0
        %1036 = vmatprep.subr.mxu0 0.0
        %1037 = vmatpush1.msra.mxu0 0.0
        %1038 = vmatprep.subr.mxu0 0.0
        %1039 = vmatpush1.msra.mxu0 0.0
        %1040 = vmatprep.subr.mxu0 0.0
        %1041 = vmatpush1.msra.mxu0 0.0
        %1042 = vmatprep.subr.mxu0 0.0
        %1043 = vmatpush1.msra.mxu0 0.0
        %1044 = vmatprep.subr.mxu0 0.0
        %1045 = vmatpush1.msra.mxu0 0.0
        %1046 = vmatprep.mubr.f32.mxu0 0.0
        %1047 = vmatmul.mubr.f32.gmra.mrb[0].mxu0 %v980
        %v1048 = vpop.f32.mrb[0].mxu0
        %v1049 = vadd.f32 %v976, %v1048
        %v1050 = vpop.f32.mrb[0].mxu0
        %v1051 = vadd.f32 %v976, %v1050
        %1052 = vdwg.mxu0
        %v1055 = vcombine.low %v1049, %v1051
        %v1057 = vunpack.c.l.s4 1983009808
        %v1058 = vunpack.c.0.s8 %v1057
        %v1059 = vlaneseq
        %v1060 = vshrl.u32 %v1059, 7
        %v1061 = vsub.s32 %v1058, %v1060
        %v1062 = vrot.slane %v1055, %v1061
        %1064 = vst [vmem:[%s284] sm:$0xf] %v1062
        %s1065 = sand.u32 %s181, 1
        %s1066 = scalar_lea.sflag [#allocation3], %s1065
        %s1067 = sand.u32 %s181, 1
        %s1068 = smul.addr %s1067, 4
        %s1069 = scalar_lea.vmem [#allocation2], %s1068
        // Predicated region
        $region49: #{tpu_custom_call.1} parent=47 // pred_check
          %p1070 = pneg %p191
        $region50: #{tpu_custom_call.1} parent=47 // pred_check_branch
          %1072 = sbr.rel (%p1070) target = $region52
        $region51: #{tpu_custom_call.1} parent=47 // pred_region
          %s1073 = smul.u32 2, %s21
          %s1074 = ssub.s32 5, %s1073
          %p1075 = scmp.lt.s32.totalorder %s1074, 2
          %s1076 = scalar_select %p1075, %s1074, 2
          %s1077 = smul.u32 32, %s1076
          %s1079 = ssub.s32 64, %s1077
          %1080 = vsyncadd %s1066, %s1079
          %p1081 = scmp.ne.s32.totalorder 0, %s1077
          %s1082 = smul.addr %s1073, 32
          %s1083 = scalar_lea.hbm %s7, %s1082
          %s1084 = smul.u32 %s1076, 2
          %s1085 = sshll.u32 %s1084, 4
          %s1086 = sshll.u32 %s1069, 4
          %s1087 = int_to_ptr.vmem [resolvable:$true] %s1086
          %1089 = dma.vmem_to_hbm [thread:$0]  (%p1081), %s1087, %s1085, %s1083, %s1066
        $region52: #{tpu_custom_call.1} parent=47 // pred_fallthru
          _
      $region48: #{tpu_custom_call.1} parent=5 // pred_fallthru
        _
      %p1090 = scmp.le.s32.totalorder 2, %s16
      // Predicated region
      $region53: #{tpu_custom_call.1} parent=5 // pred_check
        %p1091 = pneg %p1090
      $region54: #{tpu_custom_call.1} parent=5 // pred_check_branch
        %1093 = sbr.rel (%p1091) target = $region56
      $region55: #{tpu_custom_call.1} parent=5 // pred_region
        %s1094 = ssub.s32 %s16, 2
        // Predicated region
        $region57: #{tpu_custom_call.1} parent=55 // pred_check
          %p1095 = pneg %p197
        $region58: #{tpu_custom_call.1} parent=55 // pred_check_branch
          %1097 = sbr.rel (%p1095) target = $region60
        $region59: #{tpu_custom_call.1} parent=55 // pred_region
          %s1098 = sand.u32 %s182, 1
          %s1099 = scalar_lea.sflag [#allocation3], %s1098
          %s1100 = sand.u32 %s182, 1
          %s1101 = smul.addr %s1100, 4
          %s1102 = scalar_lea.vmem [#allocation2], %s1101
          %1103 = dma.done %s1099, 64
        $region60: #{tpu_custom_call.1} parent=55 // pred_fallthru
          _
      $region56: #{tpu_custom_call.1} parent=5 // pred_fallthru
        _
    $region6: #{tpu_custom_call.1} parent=1 // loop_footer
      %s20 = sadd.s32 1, %s16
    $region7: #{tpu_custom_call.1} parent=1 // loop_footer_branch
      %15 = sbr.rel target = $region3
    $region8: #{tpu_custom_call.1} parent=1 // loop_exit
      _
    %1104 = vsyncpa [#allocation3], 1
    %s1105 = scalar_lea.sflag [#allocation3], 1
    %1106 = vsyncpa %s1105, 1

</llo_original>
